<compile_context>
chip_gen: v7x
topology: tpu7x:2x2x1
jax: 0.10.0
libtpu: 0.0.40
codegen_flags: <defaults>
</compile_context>

<pallas_src>
import jax
import jax.numpy as jnp
import numpy as np
from jax.experimental import pallas as pl
from jax.experimental.pallas import tpu as pltpu


def _channel_mix(x, wbd_ref, bc, t):
    """h = blockdiag(Wx) @ x via unrolled VPU broadcast-FMAs (no MXU)."""
    w = wbd_ref[...].astype(jnp.float32)            # [BC, BC]  (one vreg)
    h = jnp.zeros((bc, t), jnp.float32)
    for j in range(bc):                             # BC=8 unrolled FMAs
        h = h + w[:, j:j + 1] * x[j:j + 1, :]       # [BC,1]*[1,T] -> [BC,T]
    return h


def _make_cfg_kernel(B, C, T):
    """mask=None variant: out = blockdiag(Wx) @ x + folded-CFG bias."""
    BC = B * C

    def kernel(x_ref, wbd_ref, bias_ref, out_ref):
        x = x_ref[...].astype(jnp.float32)                        # [BC, T]
        h = _channel_mix(x, wbd_ref, BC, T)
        out_ref[...] = (h + bias_ref[...]).astype(out_ref.dtype)

    return kernel


def _make_cfg_mask_kernel(B, C, T):
    """mask variant: out = orig*mask + (1-mask)*(blockdiag(Wx) @ x + bias)."""
    BC = B * C

    def kernel(x_ref, mask_ref, orig_ref, wbd_ref, bias_ref, out_ref):
        x = x_ref[...].astype(jnp.float32)                        # [BC, T]
        pred = _channel_mix(x, wbd_ref, BC, T) + bias_ref[...]
        # broadcast per-batch spatial mask [B, T] over channels -> [BC, T]
        m = jnp.concatenate(
            [jnp.broadcast_to(mask_ref[b:b + 1, :].astype(jnp.float32), (C, T))
             for b in range(B)], axis=0)
        orig = orig_ref[...].astype(jnp.float32)
        # same polarity as the original module: orig kept where mask == 1
        out_ref[...] = (orig * m + (1.0 - m) * pred).astype(out_ref.dtype)

    return kernel


def cfg_denoiser_forward(params, x, sigma, uncond, cond, cond_scale,
                         mask=None, orig_latent=None, io_dtype=jnp.float32):
    """Equivalent of CFGDenoiser.forward (with a synthetic inner model)."""
    # TODO(synk): the real inner_model is the full SD UNet; it is replaced here
    # by a deterministic synthetic denoiser with the same call signature.
    wx, tw, tb, wc = (jnp.asarray(p, jnp.float32) for p in params)

    x = jnp.asarray(x)
    if x.ndim == 3:                                   # ensure_4_dim
        x = x[None]
    B, C, H, W = x.shape
    HW, BC = H * W, B * C

    # ---- tiny O(B*C) folded CFG bias: temb + proj_u + cs*(proj_c - proj_u) --
    sigma = jnp.broadcast_to(
        jnp.atleast_1d(jnp.asarray(sigma, jnp.float32)).reshape(-1), (B,))
    pooled_u = jnp.mean(jnp.asarray(uncond, jnp.float32), axis=1)     # [B, D]
    pooled_c = jnp.mean(jnp.asarray(cond, jnp.float32), axis=1)       # [B, D]
    proj_u = pooled_u @ wc.T                                          # [B, C]
    proj_c = pooled_c @ wc.T                                          # [B, C]
    temb = sigma[:, None] * tw[:, 0][None, :] + tb[:, 0][None, :]     # [B, C]
    bias = temb + proj_u + jnp.float32(cond_scale) * (proj_c - proj_u)
    bias_flat = bias.reshape(BC, 1)

    # block-diagonal channel-mix weight keeps batches independent after the
    # sublane-dense [B, C, HW] -> [B*C, HW] flatten.
    wbd = jnp.kron(jnp.eye(B, dtype=jnp.float32), wx)                 # [BC, BC]

    x_flat = x.reshape(BC, HW).astype(io_dtype)

    # lane tile: as large as possible while keeping >=2 parallel grid steps
    # (v7x has 2 TensorCores per chip); fall back to one full-width block.
    T = HW
    for cand in (512, 256, 128):
        if HW % cand == 0 and HW // cand >= 2:
            T = cand
            break
    grid = (HW // T,)
    cparams = pltpu.CompilerParams(dimension_semantics=("parallel",))
    out_shape = jax.ShapeDtypeStruct((BC, HW), io_dtype)

    if mask is None:
        out = pl.pallas_call(
            _make_cfg_kernel(B, C, T),
            out_shape=out_shape,
            grid=grid,
            in_specs=[
                pl.BlockSpec((BC, T), lambda t: (0, t)),      # x (flattened)
                pl.BlockSpec((BC, BC), lambda t: (0, 0)),     # blockdiag(Wx)
                pl.BlockSpec((BC, 1), lambda t: (0, 0)),      # folded CFG bias
            ],
            out_specs=pl.BlockSpec((BC, T), lambda t: (0, t)),
            compiler_params=cparams,
        )(x_flat, wbd, bias_flat)
    else:
        assert orig_latent is not None
        # mask stays un-broadcast over channels: only [B, HW] goes over HBM.
        mask_f = jnp.broadcast_to(jnp.asarray(mask, jnp.float32),
                                  (B, 1, H, W)).reshape(B, HW)
        orig_f = jnp.asarray(orig_latent).reshape(BC, HW).astype(io_dtype)
        out = pl.pallas_call(
            _make_cfg_mask_kernel(B, C, T),
            out_shape=out_shape,
            grid=grid,
            in_specs=[
                pl.BlockSpec((BC, T), lambda t: (0, t)),      # x
                pl.BlockSpec((B, T), lambda t: (0, t)),       # mask [B, HW]
                pl.BlockSpec((BC, T), lambda t: (0, t)),      # orig_latent
                pl.BlockSpec((BC, BC), lambda t: (0, 0)),     # blockdiag(Wx)
                pl.BlockSpec((BC, 1), lambda t: (0, 0)),      # folded CFG bias
            ],
            out_specs=pl.BlockSpec((BC, T), lambda t: (0, t)),
            compiler_params=cparams,
        )(x_flat, mask_f, orig_f, wbd, bias_flat)

    return out.reshape(B, C, H, W)


def _reference(params, x, sigma, uncond, cond, cond_scale,
               mask=None, orig_latent=None):
    """Pure-JAX reference reproducing get_noise_prediction + mask blend."""
    wx, tw, tb, wc = (jnp.asarray(p, jnp.float32) for p in params)
    x = jnp.asarray(x, jnp.float32)
    if x.ndim == 3:
        x = x[None]
    B = x.shape[0]
    sigma = jnp.broadcast_to(
        jnp.atleast_1d(jnp.asarray(sigma, jnp.float32)).reshape(-1), (B,))

    def inner(xin, sin, cin):
        h = jnp.einsum('oc,bchw->bohw', wx, xin)
        temb = sin[:, None] * tw[None, :, 0] + tb[None, :, 0]        # [2B, C]
        proj = cin.mean(axis=1) @ wc.T                               # [2B, C]
        return h + (temb + proj)[:, :, None, None]

    x_in = jnp.concatenate([x, x])
    s_in = jnp.concatenate([sigma, sigma])
    c_in = jnp.concatenate([jnp.asarray(uncond, jnp.float32),
                            jnp.asarray(cond, jnp.float32)])
    eps = inner(x_in, s_in, c_in)
    eps_u, eps_c = eps[:B], eps[B:]
    pred = eps_u + cond_scale * (eps_c - eps_u)
    if mask is not None:
        m = jnp.broadcast_to(jnp.asarray(mask, jnp.float32), x.shape)
        pred = jnp.asarray(orig_latent, jnp.float32) * m + (1.0 - m) * pred
    return pred


if __name__ == "__main__":
    B, C, H, W = 2, 4, 16, 16
    S, D = 8, 32
    cond_scale = 7.5

    key = jax.random.PRNGKey(0)
    (k_x, k_s, k_u, k_c, k_wx, k_tw, k_tb, k_wc, k_m, k_o) = jax.random.split(key, 10)

    x      = jax.random.normal(k_x, (B, C, H, W), jnp.float32)
    sigma  = jax.random.uniform(k_s, (B,), jnp.float32, 0.1, 1.0)
    uncond = jax.random.normal(k_u, (B, S, D), jnp.float32)
    cond   = jax.random.normal(k_c, (B, S, D), jnp.float32)

    # deterministic synthetic "inner model" parameters
    wx = jax.random.normal(k_wx, (C, C), jnp.float32) * 0.5
    tw = jax.random.normal(k_tw, (C, 1), jnp.float32) * 0.5
    tb = jax.random.normal(k_tb, (C, 1), jnp.float32) * 0.1
    wc = jax.random.normal(k_wc, (C, D), jnp.float32) * 0.2
    params = (wx, tw, tb, wc)

    # --- path 1: mask=None (no zero-tensor DMAs) -----------------------------
    out = jax.block_until_ready(
        cfg_denoiser_forward(params, x, sigma, uncond, cond, cond_scale))
    ref = jax.block_until_ready(
        _reference(params, x, sigma, uncond, cond, cond_scale))
    assert out.shape == (B, C, H, W)
    np.testing.assert_allclose(np.asarray(out), np.asarray(ref),
                               rtol=1e-5, atol=1e-5)

    # --- path 2: inpainting mask blend (mask un-broadcast over channels) -----
    mask = (jax.random.uniform(k_m, (B, 1, H, W)) > 0.5).astype(jnp.float32)
    orig = jax.random.normal(k_o, (B, C, H, W), jnp.float32)
    out_m = jax.block_until_ready(
        cfg_denoiser_forward(params, x, sigma, uncond, cond, cond_scale,
                             mask=mask, orig_latent=orig))
    ref_m = jax.block_until_ready(
        _reference(params, x, sigma, uncond, cond, cond_scale,
                   mask=mask, orig_latent=orig))
    np.testing.assert_allclose(np.asarray(out_m), np.asarray(ref_m),
                               rtol=1e-5, atol=1e-5)

    # --- path 3: scalar sigma + 3-D x (ensure_4_dim) --------------------------
    out_s = jax.block_until_ready(
        cfg_denoiser_forward(params, x[0], 0.35, uncond[:1], cond[:1], cond_scale))
    ref_s = jax.block_until_ready(
        _reference(params, x[0:1], 0.35, uncond[:1], cond[:1], cond_scale))
    np.testing.assert_allclose(np.asarray(out_s), np.asarray(ref_s),
                               rtol=1e-5, atol=1e-5)

    print("KERNEL_OK")
</pallas_src>

<mosaic_0001>
module attributes {stable_mosaic.version = 11 : i64} {
  func.func @kernel(%arg0: i32, %arg1: memref<8x128xf32, #tpu.memory_space<vmem>>, %arg2: memref<8x8xf32, #tpu.memory_space<vmem>>, %arg3: memref<8x1xf32, #tpu.memory_space<vmem>>, %arg4: memref<8x128xf32, #tpu.memory_space<vmem>>) attributes {dimension_semantics = [#tpu.dimension_semantics<parallel>], iteration_bounds = array<i64: 2>, scalar_prefetch = 0 : i64, scratch_operands = 0 : i64, tpu.core_type = #tpu.core_type<tc>, window_params = [{transform_indices = @transform_0, window_bounds = array<i64: 8, 128>}, {pipeline_mode = #tpu.pipeline_mode<synchronous>, transform_indices = @transform_1, window_bounds = array<i64: 8, 8>}, {pipeline_mode = #tpu.pipeline_mode<synchronous>, transform_indices = @transform_2, window_bounds = array<i64: 8, 1>}, {transform_indices = @transform_3, window_bounds = array<i64: 8, 128>}]} {
    %c0 = arith.constant 0 : index
    %c0_0 = arith.constant 0 : index
    %0 = vector.load %arg1[%c0, %c0_0] : memref<8x128xf32, #tpu.memory_space<vmem>>, vector<8x128xf32>
    %c0_1 = arith.constant 0 : index
    %c0_2 = arith.constant 0 : index
    %1 = vector.load %arg2[%c0_1, %c0_2] : memref<8x8xf32, #tpu.memory_space<vmem>>, vector<8x8xf32>
    %cst = arith.constant 0.000000e+00 : f32
    %2 = vector.broadcast %cst : f32 to vector<8x128xf32>
    %3 = vector.extract_strided_slice %1 {offsets = [0, 0], sizes = [8, 1], strides = [1, 1]} : vector<8x8xf32> to vector<8x1xf32>
    %4 = vector.extract_strided_slice %0 {offsets = [0, 0], sizes = [1, 128], strides = [1, 1]} : vector<8x128xf32> to vector<1x128xf32>
    %5 = vector.broadcast %3 : vector<8x1xf32> to vector<8x128xf32>
    %6 = vector.broadcast %4 : vector<1x128xf32> to vector<8x128xf32>
    %7 = arith.mulf %5, %6 : vector<8x128xf32>
    %8 = arith.addf %2, %7 : vector<8x128xf32>
    %9 = vector.extract_strided_slice %1 {offsets = [0, 1], sizes = [8, 1], strides = [1, 1]} : vector<8x8xf32> to vector<8x1xf32>
    %10 = vector.extract_strided_slice %0 {offsets = [1, 0], sizes = [1, 128], strides = [1, 1]} : vector<8x128xf32> to vector<1x128xf32>
    %11 = vector.broadcast %9 : vector<8x1xf32> to vector<8x128xf32>
    %12 = vector.broadcast %10 : vector<1x128xf32> to vector<8x128xf32>
    %13 = arith.mulf %11, %12 : vector<8x128xf32>
    %14 = arith.addf %8, %13 : vector<8x128xf32>
    %15 = vector.extract_strided_slice %1 {offsets = [0, 2], sizes = [8, 1], strides = [1, 1]} : vector<8x8xf32> to vector<8x1xf32>
    %16 = vector.extract_strided_slice %0 {offsets = [2, 0], sizes = [1, 128], strides = [1, 1]} : vector<8x128xf32> to vector<1x128xf32>
    %17 = vector.broadcast %15 : vector<8x1xf32> to vector<8x128xf32>
    %18 = vector.broadcast %16 : vector<1x128xf32> to vector<8x128xf32>
    %19 = arith.mulf %17, %18 : vector<8x128xf32>
    %20 = arith.addf %14, %19 : vector<8x128xf32>
    %21 = vector.extract_strided_slice %1 {offsets = [0, 3], sizes = [8, 1], strides = [1, 1]} : vector<8x8xf32> to vector<8x1xf32>
    %22 = vector.extract_strided_slice %0 {offsets = [3, 0], sizes = [1, 128], strides = [1, 1]} : vector<8x128xf32> to vector<1x128xf32>
    %23 = vector.broadcast %21 : vector<8x1xf32> to vector<8x128xf32>
    %24 = vector.broadcast %22 : vector<1x128xf32> to vector<8x128xf32>
    %25 = arith.mulf %23, %24 : vector<8x128xf32>
    %26 = arith.addf %20, %25 : vector<8x128xf32>
    %27 = vector.extract_strided_slice %1 {offsets = [0, 4], sizes = [8, 1], strides = [1, 1]} : vector<8x8xf32> to vector<8x1xf32>
    %28 = vector.extract_strided_slice %0 {offsets = [4, 0], sizes = [1, 128], strides = [1, 1]} : vector<8x128xf32> to vector<1x128xf32>
    %29 = vector.broadcast %27 : vector<8x1xf32> to vector<8x128xf32>
    %30 = vector.broadcast %28 : vector<1x128xf32> to vector<8x128xf32>
    %31 = arith.mulf %29, %30 : vector<8x128xf32>
    %32 = arith.addf %26, %31 : vector<8x128xf32>
    %33 = vector.extract_strided_slice %1 {offsets = [0, 5], sizes = [8, 1], strides = [1, 1]} : vector<8x8xf32> to vector<8x1xf32>
    %34 = vector.extract_strided_slice %0 {offsets = [5, 0], sizes = [1, 128], strides = [1, 1]} : vector<8x128xf32> to vector<1x128xf32>
    %35 = vector.broadcast %33 : vector<8x1xf32> to vector<8x128xf32>
    %36 = vector.broadcast %34 : vector<1x128xf32> to vector<8x128xf32>
    %37 = arith.mulf %35, %36 : vector<8x128xf32>
    %38 = arith.addf %32, %37 : vector<8x128xf32>
    %39 = vector.extract_strided_slice %1 {offsets = [0, 6], sizes = [8, 1], strides = [1, 1]} : vector<8x8xf32> to vector<8x1xf32>
    %40 = vector.extract_strided_slice %0 {offsets = [6, 0], sizes = [1, 128], strides = [1, 1]} : vector<8x128xf32> to vector<1x128xf32>
    %41 = vector.broadcast %39 : vector<8x1xf32> to vector<8x128xf32>
    %42 = vector.broadcast %40 : vector<1x128xf32> to vector<8x128xf32>
    %43 = arith.mulf %41, %42 : vector<8x128xf32>
    %44 = arith.addf %38, %43 : vector<8x128xf32>
    %45 = vector.extract_strided_slice %1 {offsets = [0, 7], sizes = [8, 1], strides = [1, 1]} : vector<8x8xf32> to vector<8x1xf32>
    %46 = vector.extract_strided_slice %0 {offsets = [7, 0], sizes = [1, 128], strides = [1, 1]} : vector<8x128xf32> to vector<1x128xf32>
    %47 = vector.broadcast %45 : vector<8x1xf32> to vector<8x128xf32>
    %48 = vector.broadcast %46 : vector<1x128xf32> to vector<8x128xf32>
    %49 = arith.mulf %47, %48 : vector<8x128xf32>
    %50 = arith.addf %44, %49 : vector<8x128xf32>
    %c0_3 = arith.constant 0 : index
    %c0_4 = arith.constant 0 : index
    %51 = vector.load %arg3[%c0_3, %c0_4] : memref<8x1xf32, #tpu.memory_space<vmem>>, vector<8x1xf32>
    %52 = vector.broadcast %51 : vector<8x1xf32> to vector<8x128xf32>
    %53 = arith.addf %50, %52 : vector<8x128xf32>
    %c0_5 = arith.constant 0 : index
    %c0_6 = arith.constant 0 : index
    %54 = vector.load %arg4[%c0_5, %c0_6] : memref<8x128xf32, #tpu.memory_space<vmem>>, vector<8x128xf32>
    tpu.vector_store %arg4[%c0_5, %c0_6], %53 {strides = array<i32>} : memref<8x128xf32, #tpu.memory_space<vmem>>, vector<8x128xf32>,
    return
  }
  func.func @transform_0(%arg0: i32) -> (i32, i32) {
    %c0_i32 = arith.constant 0 : i32
    %c0_i32_0 = arith.constant 0 : i32
    return %c0_i32, %arg0 : i32, i32
  }
  func.func @transform_1(%arg0: i32) -> (i32, i32) {
    %c0_i32 = arith.constant 0 : i32
    %c0_i32_0 = arith.constant 0 : i32
    %c0_i32_1 = arith.constant 0 : i32
    return %c0_i32, %c0_i32_0 : i32, i32
  }
  func.func @transform_2(%arg0: i32) -> (i32, i32) {
    %c0_i32 = arith.constant 0 : i32
    %c0_i32_0 = arith.constant 0 : i32
    %c0_i32_1 = arith.constant 0 : i32
    return %c0_i32, %c0_i32_0 : i32, i32
  }
  func.func @transform_3(%arg0: i32) -> (i32, i32) {
    %c0_i32 = arith.constant 0 : i32
    %c0_i32_0 = arith.constant 0 : i32
    return %c0_i32, %arg0 : i32, i32
  }
}

</mosaic_0001>

<llo_original>
// kernel: tpu_custom_call.1
$region0: #{tpu_custom_call.1}
  #allocation0 [shape = 'u32[]', space=smem, size = 0x4, offset = 0x4, fixed_abs, tag = 'smem constant byte address 0x4 - core index']
  #allocation1 [shape = 'u32[144,128]{1,0:T(1,128)}', space=vmem, size = 0x12000, scoped, tag = 'internal scratch']
  %s0 = inlined_call_operand.hbm [shape: f32[8,256], index: 0, kind: input, shape index: {}]
  %s1 = inlined_call_operand.vmem [shape: f32[8,8], index: 1, kind: input, shape index: {}]
  %s2 = inlined_call_operand.vmem [shape: f32[8,1], index: 2, kind: input, shape index: {}]
  %s3 = inlined_call_operand.hbm [shape: f32[8,256], index: 3, kind: output, shape index: {}]
  %s4 = sld [smem:[#allocation0]]
  $region49: #{tpu_custom_call.1} parent=0
    _
  %s6 = ssub.s32 1, %s4
  %s7 = scalar_select 0, %s6, %s4
  $region1: #{tpu_custom_call.1} parent=0
    #allocation2 [shape = 'u8[8192]{0}', space=vmem, size = 0x2000, scoped, tag = 'input window, operand 0']
    #allocation3 [shape = 's32[2]{0}', space=sflag, size = 0x8, scoped, tag = 'scoped memory for tpu_custom_call.1']
    #allocation4 [shape = 's32[2]{0}', space=sflag, size = 0x8, scoped, tag = 'scoped memory for tpu_custom_call.1']
    #allocation5 [shape = 'u8[8192]{0}', space=vmem, size = 0x2000, scoped, tag = 'output window, operand 0']
    %8 = vsyncpa [#allocation3], 0
    %s9 = scalar_lea.sflag [#allocation3], 1
    %10 = vsyncpa %s9, 0
    %11 = vsyncpa [#allocation4], 0
    %s12 = scalar_lea.sflag [#allocation4], 1
    %13 = vsyncpa %s12, 0
    loop: start=0, step=1, limit=4
    $region2: #{tpu_custom_call.1} parent=1 // loop_pre_header
      _
    $region3: #{tpu_custom_call.1} parent=1 // loop_header
      %s15 = sphi 0, %s19
      %p16 = scmp.ge.s32.totalorder %s15, 4
      %s25 = sphi 0, %s27
      %s28 = sphi 0, %s25
      %s29 = sphi 0, %s28
      %s45 = sphi 0, %s29
      %s49 = sphi 0, %s49
      %s51 = sphi 0, %s49
      %s52 = sphi 0, %s51
      %s66 = sphi 0, %s52
      %s70 = sphi 0, %s70
      %s72 = sphi 0, %s70
      %s73 = sphi 0, %s72
      %s87 = sphi 0, %s73
      %s93 = sphi 0, %s95
      %s96 = sphi 0, %s93
      %s97 = sphi 0, %s96
      %s113 = sphi 0, %s97
    $region4: #{tpu_custom_call.1} parent=1 // loop_header_branch
      %18 = sbr.rel (%p16) target = $region8
    $region5: #{tpu_custom_call.1} parent=1 // loop_body
      %s20 = ssub.s32 %s15, 1
      %s21 = ssub.s32 %s15, 2
      %s22 = sadd.s32 %s15, 1
      %s23 = ssub.s32 %s15, %s22
      %p24 = scmp.eq.s32.totalorder %s23, 0
      %s26 = sadd.s32 %s25, 1
      %s27 = scalar_select %p24, %s25, %s26
      %p30 = pneg %p24
      %p31 = scmp.eq.s32.totalorder %s15, 1
      %p32 = por %p30, %p31
      %p33 = scmp.ne.s32.totalorder %s25, %s28
      %p34 = scmp.eq.s32.totalorder %s15, 0
      %p35 = por %p33, %p34
      %p36 = scmp.ne.s32.totalorder %s25, %s28
      %p37 = scmp.eq.s32.totalorder %s20, 1
      %p38 = por %p36, %p37
      %p39 = scmp.ne.s32.totalorder %s28, %s29
      %p40 = scmp.eq.s32.totalorder %s20, 0
      %p41 = por %p39, %p40
      %p42 = scmp.ne.s32.totalorder %s28, %s29
      %p43 = scmp.eq.s32.totalorder %s21, 1
      %p44 = por %p42, %p43
      %p46 = scmp.ne.s32.totalorder %s29, %s45
      %p47 = scmp.eq.s32.totalorder %s21, 0
      %p48 = por %p46, %p47
      %s50 = sadd.s32 %s49, 1
      %p53 = scmp.eq.s32.totalorder %s15, 1
      %p54 = scmp.ne.s32.totalorder %s49, %s51
      %p55 = scmp.eq.s32.totalorder %s15, 0
      %p56 = por %p54, %p55
      %p57 = scmp.ne.s32.totalorder %s49, %s51
      %p58 = scmp.eq.s32.totalorder %s20, 1
      %p59 = por %p57, %p58
      %p60 = scmp.ne.s32.totalorder %s51, %s52
      %p61 = scmp.eq.s32.totalorder %s20, 0
      %p62 = por %p60, %p61
      %p63 = scmp.ne.s32.totalorder %s51, %s52
      %p64 = scmp.eq.s32.totalorder %s21, 1
      %p65 = por %p63, %p64
      %p67 = scmp.ne.s32.totalorder %s52, %s66
      %p68 = scmp.eq.s32.totalorder %s21, 0
      %p69 = por %p67, %p68
      %s71 = sadd.s32 %s70, 1
      %p74 = scmp.eq.s32.totalorder %s15, 1
      %p75 = scmp.ne.s32.totalorder %s70, %s72
      %p76 = scmp.eq.s32.totalorder %s15, 0
      %p77 = por %p75, %p76
      %p78 = scmp.ne.s32.totalorder %s70, %s72
      %p79 = scmp.eq.s32.totalorder %s20, 1
      %p80 = por %p78, %p79
      %p81 = scmp.ne.s32.totalorder %s72, %s73
      %p82 = scmp.eq.s32.totalorder %s20, 0
      %p83 = por %p81, %p82
      %p84 = scmp.ne.s32.totalorder %s72, %s73
      %p85 = scmp.eq.s32.totalorder %s21, 1
      %p86 = por %p84, %p85
      %p88 = scmp.ne.s32.totalorder %s73, %s87
      %p89 = scmp.eq.s32.totalorder %s21, 0
      %p90 = por %p88, %p89
      %s91 = ssub.s32 %s15, %s22
      %p92 = scmp.eq.s32.totalorder %s91, 0
      %s94 = sadd.s32 %s93, 1
      %s95 = scalar_select %p92, %s93, %s94
      %p98 = pneg %p92
      %p99 = scmp.eq.s32.totalorder %s15, 1
      %p100 = por %p98, %p99
      %p101 = scmp.ne.s32.totalorder %s93, %s96
      %p102 = scmp.eq.s32.totalorder %s15, 0
      %p103 = por %p101, %p102
      %p104 = scmp.ne.s32.totalorder %s93, %s96
      %p105 = scmp.eq.s32.totalorder %s20, 1
      %p106 = por %p104, %p105
      %p107 = scmp.ne.s32.totalorder %s96, %s97
      %p108 = scmp.eq.s32.totalorder %s20, 0
      %p109 = por %p107, %p108
      %p110 = scmp.ne.s32.totalorder %s96, %s97
      %p111 = scmp.eq.s32.totalorder %s21, 1
      %p112 = por %p110, %p111
      %p114 = scmp.ne.s32.totalorder %s97, %s113
      %p115 = scmp.eq.s32.totalorder %s21, 0
      %p116 = por %p114, %p115
      %p117 = scmp.le.s32.totalorder 1, %s15
      %p118 = scmp.lt.s32.totalorder %s15, 3
      %p119 = pnand %p117, %p118
      %p120 = pneg %p119
      // Predicated region
      $region9: #{tpu_custom_call.1} parent=5 // pred_check
        _
      $region10: #{tpu_custom_call.1} parent=5 // pred_check_branch
        %122 = sbr.rel (%p119) target = $region12
      $region11: #{tpu_custom_call.1} parent=5 // pred_region
        %s123 = ssub.s32 %s15, 1
        // Predicated region
        $region13: #{tpu_custom_call.1} parent=11 // pred_check
          %p124 = pneg %p62
        $region14: #{tpu_custom_call.1} parent=11 // pred_check_branch
          %126 = sbr.rel (%p124) target = $region16
        $region15: #{tpu_custom_call.1} parent=11 // pred_region
          _
        $region16: #{tpu_custom_call.1} parent=11 // pred_fallthru
          _
        // Predicated region
        $region17: #{tpu_custom_call.1} parent=11 // pred_check
          %p127 = pneg %p83
        $region18: #{tpu_custom_call.1} parent=11 // pred_check_branch
          %129 = sbr.rel (%p127) target = $region20
        $region19: #{tpu_custom_call.1} parent=11 // pred_region
          _
        $region20: #{tpu_custom_call.1} parent=11 // pred_fallthru
          _
      $region12: #{tpu_custom_call.1} parent=5 // pred_fallthru
        _
      %p130 = scmp.lt.s32.totalorder %s15, 2
      // Predicated region
      $region21: #{tpu_custom_call.1} parent=5 // pred_check
        %p131 = pneg %p130
      $region22: #{tpu_custom_call.1} parent=5 // pred_check_branch
        %133 = sbr.rel (%p131) target = $region24
      $region23: #{tpu_custom_call.1} parent=5 // pred_region
        // Predicated region
        $region25: #{tpu_custom_call.1} parent=23 // pred_check
          %p134 = pneg %p35
        $region26: #{tpu_custom_call.1} parent=23 // pred_check_branch
          %136 = sbr.rel (%p134) target = $region28
        $region27: #{tpu_custom_call.1} parent=23 // pred_region
          %s137 = sand.u32 %s25, 1
          %s138 = scalar_lea.sflag [#allocation3], %s137
          %s139 = sand.u32 %s25, 1
          %s140 = smul.addr %s139, 8
          %s141 = scalar_lea.vmem [#allocation2], %s140
          %s143 = ssub.s32 128, 128
          %144 = vsyncadd %s138, %s143
          %s145 = smul.addr %s15, 128
          %s146 = scalar_lea.hbm %s0, %s145
          %s148 = sshll.u32 %s141, 4
          %s149 = int_to_ptr.vmem [resolvable:$true] %s148
          %151 = dma.hbm_to_vmem [thread:$0]  %s146, 128, %s149, %s138
        $region28: #{tpu_custom_call.1} parent=23 // pred_fallthru
          _
      $region24: #{tpu_custom_call.1} parent=5 // pred_fallthru
        _
      %p152 = scmp.le.s32.totalorder 1, %s15
      %p153 = scmp.lt.s32.totalorder %s15, 3
      %p154 = pnand %p152, %p153
      %p155 = pneg %p154
      // Predicated region
      $region29: #{tpu_custom_call.1} parent=5 // pred_check
        _
      $region30: #{tpu_custom_call.1} parent=5 // pred_check_branch
        %157 = sbr.rel (%p154) target = $region32
      $region31: #{tpu_custom_call.1} parent=5 // pred_region
        %s158 = ssub.s32 %s15, 1
        %s159 = sand.u32 %s28, 1
        %s160 = scalar_lea.sflag [#allocation3], %s159
        %s161 = sand.u32 %s28, 1
        %s162 = smul.addr %s161, 8
        %s163 = scalar_lea.vmem [#allocation2], %s162
        // Predicated region
        $region33: #{tpu_custom_call.1} parent=31 // pred_check
          %p164 = pneg %p41
        $region34: #{tpu_custom_call.1} parent=31 // pred_check_branch
          %166 = sbr.rel (%p164) target = $region36
        $region35: #{tpu_custom_call.1} parent=31 // pred_region
          %167 = dma.done %s160, 128
        $region36: #{tpu_custom_call.1} parent=31 // pred_fallthru
          _
        %s168 = sand.u32 %s28, 1
        %s169 = scalar_lea.sflag [#allocation3], %s168
        %s170 = sand.u32 %s28, 1
        %s171 = smul.addr %s170, 8
        %s172 = scalar_lea.vmem [#allocation2], %s171
        %p173 = pneg %p41
        %p174 = pneg %p38
        %p175 = pneg %p62
        %p176 = pneg %p59
        %p177 = pneg %p83
        %p178 = pneg %p80
        %p179 = pneg %p109
        %p180 = pneg %p106
        %s181 = sand.u32 %s96, 1
        %s182 = scalar_lea.sflag [#allocation4], %s181
        %s183 = sand.u32 %s96, 1
        %s184 = smul.addr %s183, 8
        %s185 = scalar_lea.vmem [#allocation5], %s184
        %v186 = vld [vmem:[%s163] sm:$0xff]
        %v187 = vld [vmem:[%s1] sm:$0xff]
        %189 = vset.pattern.permute.xlu0 0
        %190 = vperm.xlu0 %189, %v187
        %v191 = vpop.permute.xlu0 %190
        %v193 = vlaneseq
        %v194 = vshrl.u32 %v193, 7
        %v195 = vsub.s32 0, %v194
        %v196 = vrot.slane %v186, %v195
        %v197 = vmul.f32 %v191, %v196
        %v198 = vadd.f32 %v197, 0.0
        %199 = vset.pattern.permute.xlu0 1
        %200 = vperm.xlu0 %199, %v187
        %v201 = vpop.permute.xlu0 %200
        %v203 = vlaneseq
        %v204 = vshrl.u32 %v203, 7
        %v205 = vsub.s32 1, %v204
        %v206 = vrot.slane %v186, %v205
        %v207 = vmul.f32 %v201, %v206
        %v208 = vadd.f32 %v198, %v207
        %209 = vset.pattern.permute.xlu0 2
        %210 = vperm.xlu0 %209, %v187
        %v211 = vpop.permute.xlu0 %210
        %v213 = vlaneseq
        %v214 = vshrl.u32 %v213, 7
        %v215 = vsub.s32 2, %v214
        %v216 = vrot.slane %v186, %v215
        %v217 = vmul.f32 %v211, %v216
        %v218 = vadd.f32 %v208, %v217
        %219 = vset.pattern.permute.xlu0 3
        %220 = vperm.xlu0 %219, %v187
        %v221 = vpop.permute.xlu0 %220
        %v223 = vlaneseq
        %v224 = vshrl.u32 %v223, 7
        %v225 = vsub.s32 3, %v224
        %v226 = vrot.slane %v186, %v225
        %v227 = vmul.f32 %v221, %v226
        %v228 = vadd.f32 %v218, %v227
        %229 = vset.pattern.permute.xlu0 4
        %230 = vperm.xlu0 %229, %v187
        %v231 = vpop.permute.xlu0 %230
        %v233 = vlaneseq
        %v234 = vshrl.u32 %v233, 7
        %v235 = vsub.s32 4, %v234
        %v236 = vrot.slane %v186, %v235
        %v237 = vmul.f32 %v231, %v236
        %v238 = vadd.f32 %v228, %v237
        %239 = vset.pattern.permute.xlu0 5
        %240 = vperm.xlu0 %239, %v187
        %v241 = vpop.permute.xlu0 %240
        %v243 = vlaneseq
        %v244 = vshrl.u32 %v243, 7
        %v245 = vsub.s32 5, %v244
        %v246 = vrot.slane %v186, %v245
        %v247 = vmul.f32 %v241, %v246
        %v248 = vadd.f32 %v238, %v247
        %249 = vset.pattern.permute.xlu0 6
        %250 = vperm.xlu0 %249, %v187
        %v251 = vpop.permute.xlu0 %250
        %v253 = vlaneseq
        %v254 = vshrl.u32 %v253, 7
        %v255 = vsub.s32 6, %v254
        %v256 = vrot.slane %v186, %v255
        %v257 = vmul.f32 %v251, %v256
        %v258 = vadd.f32 %v248, %v257
        %259 = vset.pattern.permute.xlu0 7
        %260 = vperm.xlu0 %259, %v187
        %v261 = vpop.permute.xlu0 %260
        %v263 = vlaneseq
        %v264 = vshrl.u32 %v263, 7
        %v265 = vsub.s32 7, %v264
        %v266 = vrot.slane %v186, %v265
        %v267 = vmul.f32 %v261, %v266
        %v268 = vadd.f32 %v258, %v267
        %v269 = vld [vmem:[%s2] sm:$0xff]
        %271 = vset.pattern.permute.xlu0 0
        %272 = vperm.xlu0 %271, %v269
        %v273 = vpop.permute.xlu0 %272
        %v275 = vadd.f32 %v268, %v273
        %276 = vst [vmem:[%s185] sm:$0xff] %v275
        %s277 = sand.u32 %s96, 1
        %s278 = scalar_lea.sflag [#allocation4], %s277
        %s279 = sand.u32 %s96, 1
        %s280 = smul.addr %s279, 8
        %s281 = scalar_lea.vmem [#allocation5], %s280
        // Predicated region
        $region37: #{tpu_custom_call.1} parent=31 // pred_check
          %p282 = pneg %p106
        $region38: #{tpu_custom_call.1} parent=31 // pred_check_branch
          %284 = sbr.rel (%p282) target = $region40
        $region39: #{tpu_custom_call.1} parent=31 // pred_region
          %s286 = ssub.s32 128, 128
          %287 = vsyncadd %s278, %s286
          %s288 = smul.addr %s20, 128
          %s289 = scalar_lea.hbm %s3, %s288
          %s291 = sshll.u32 %s281, 4
          %s292 = int_to_ptr.vmem [resolvable:$true] %s291
          %294 = dma.vmem_to_hbm [thread:$0]  %s292, 128, %s289, %s278
        $region40: #{tpu_custom_call.1} parent=31 // pred_fallthru
          _
      $region32: #{tpu_custom_call.1} parent=5 // pred_fallthru
        _
      %p295 = scmp.le.s32.totalorder 2, %s15
      // Predicated region
      $region41: #{tpu_custom_call.1} parent=5 // pred_check
        %p296 = pneg %p295
      $region42: #{tpu_custom_call.1} parent=5 // pred_check_branch
        %298 = sbr.rel (%p296) target = $region44
      $region43: #{tpu_custom_call.1} parent=5 // pred_region
        %s299 = ssub.s32 %s15, 2
        // Predicated region
        $region45: #{tpu_custom_call.1} parent=43 // pred_check
          %p300 = pneg %p112
        $region46: #{tpu_custom_call.1} parent=43 // pred_check_branch
          %302 = sbr.rel (%p300) target = $region48
        $region47: #{tpu_custom_call.1} parent=43 // pred_region
          %s303 = sand.u32 %s97, 1
          %s304 = scalar_lea.sflag [#allocation4], %s303
          %s305 = sand.u32 %s97, 1
          %s306 = smul.addr %s305, 8
          %s307 = scalar_lea.vmem [#allocation5], %s306
          %308 = dma.done %s304, 128
        $region48: #{tpu_custom_call.1} parent=43 // pred_fallthru
          _
      $region44: #{tpu_custom_call.1} parent=5 // pred_fallthru
        _
    $region6: #{tpu_custom_call.1} parent=1 // loop_footer
      %s19 = sadd.s32 1, %s15
    $region7: #{tpu_custom_call.1} parent=1 // loop_footer_branch
      %14 = sbr.rel target = $region3
    $region8: #{tpu_custom_call.1} parent=1 // loop_exit
      _
    %309 = vsyncpa [#allocation3], 1
    %s310 = scalar_lea.sflag [#allocation3], 1
    %311 = vsyncpa %s310, 1
    %312 = vsyncpa [#allocation4], 1
    %s313 = scalar_lea.sflag [#allocation4], 1
    %314 = vsyncpa %s313, 1

</llo_original>
